<compile_context>
chip_gen: v7x
topology: tpu7x:2x2x1
jax: 0.10.0
libtpu: 0.0.40
codegen_flags: <defaults>
</compile_context>

<pallas_src>
import functools

import jax
import jax.numpy as jnp
from jax import lax
from jax.experimental import pallas as pl
from jax.experimental.pallas import tpu as pltpu


# ----------------------------------------------------------------------------
# Kernel: clipped k x k average pool (count_include_pad=False) minus identity
# ----------------------------------------------------------------------------
def _pooling_kernel(pool_size, H, W, x_ref, inv_ref, col_ref, row_ref, o_ref):
    HW = H * W
    r = pool_size // 2

    x = x_ref[...].astype(jnp.float32)      # (G, HW): one flattened image per sublane row
    col = col_ref[...]                      # (1, HW) int32 : lane % W
    row = row_ref[...]                      # (1, HW) int32 : lane // W

    # Horizontal clipped 1-D window sum: lane rolls (XLU) + (1,HW) edge masks (VPU).
    s = x
    for d in range(1, r + 1):
        if d < W:
            ml = (col >= d).astype(jnp.float32)         # drop left-edge wrap-around
            mr = (col < W - d).astype(jnp.float32)      # drop right-edge wrap-around
            s = s + pltpu.roll(x, d, axis=1) * ml       # x[.., i, j-d]
            s = s + pltpu.roll(x, HW - d, axis=1) * mr  # x[.., i, j+d]

    # Vertical clipped 1-D window sum over the horizontal partial sums.
    t = s
    for d in range(1, r + 1):
        if d < H:
            mu = (row >= d).astype(jnp.float32)
            md = (row < H - d).astype(jnp.float32)
            t = t + pltpu.roll(s, d * W, axis=1) * mu        # s[.., i-d, j]
            t = t + pltpu.roll(s, HW - d * W, axis=1) * md   # s[.., i+d, j]

    # Multiply by the reciprocal valid-count map, subtract identity.
    o_ref[...] = (t * inv_ref[...] - x).astype(o_ref.dtype)


# ----------------------------------------------------------------------------
# Host-side helpers
# ----------------------------------------------------------------------------
def _inv_count_map(h, w, pool_size):
    """Reciprocal of the AvgPool2d divisor for count_include_pad=False (separable)."""
    r = pool_size // 2

    def axis_counts(n):
        idx = jnp.arange(n)
        lo = jnp.maximum(idx - r, 0)
        hi = jnp.minimum(idx + r, n - 1)
        return (hi - lo + 1).astype(jnp.float32)

    cnt = axis_counts(h)[:, None] * axis_counts(w)[None, :]
    return (1.0 / cnt).reshape(1, h * w)


def _choose_block(M, HW, itemsize):
    """Images per grid step.

    ~2 MiB of real input per step (dtype-aware), f32 in-kernel working set
    bounded, >= 2 grid steps when possible (v7x megacore), and the
    multiple-of-8 sublane-tile constraint respected.
    """
    g = min((2 << 20) // (HW * itemsize),     # ~2 MiB of HBM input per step
            (3 << 20) // (HW * 4))            # bound f32 intermediates in VMEM
    g = max(1, g)
    if M >= 2:
        g = min(g, max(1, M // 2))            # keep >= 2 grid steps if we can
    g = min(g, M)
    if g < M:
        g = (g // 8) * 8                      # second-minor block dim: multiple of 8
        if g < 8:
            g = min(8, M)                     # tiny M: take the whole array
        g = min(g, M)
    return max(1, g)


# ----------------------------------------------------------------------------
# Wrapper: layout fold, grid/block selection, pallas_call
# ----------------------------------------------------------------------------
def pooling_forward(x_nchw, pool_size=3):
    """y = AvgPool2d(pool_size, stride=1, pad=pool_size//2, count_include_pad=False)(x) - x."""
    assert pool_size % 2 == 1, "stride-1 'same' pooling assumes an odd pool_size"
    N, C, H, W = x_nchw.shape
    M = N * C
    HW = H * W

    # Channels are pooling-invariant: fold (N, C) into the leading axis and put
    # the whole H*W image on the lane axis.  Pure reshape, zero HBM traffic.
    x = x_nchw.reshape(M, HW)

    inv_cnt = _inv_count_map(H, W, pool_size)                # (1, HW) f32
    pos = jnp.arange(HW, dtype=jnp.int32)
    col_map = (pos % W).reshape(1, HW)                       # (1, HW) int32
    row_map = (pos // W).reshape(1, HW)                      # (1, HW) int32

    itemsize = x_nchw.dtype.itemsize
    G = _choose_block(M, HW, itemsize)
    Mp = pl.cdiv(M, G) * G
    if Mp != M:
        # Pad with dummy images instead of degrading to 1-image grid steps.
        x = jnp.pad(x, ((0, Mp - M), (0, 0)))
    grid = (Mp // G,)

    elems = M * HW
    cost = pl.CostEstimate(
        flops=elems * (8 * (pool_size // 2) + 2),
        transcendentals=0,
        bytes_accessed=2 * elems * itemsize + 3 * HW * 4,
    )

    out = pl.pallas_call(
        functools.partial(_pooling_kernel, pool_size, H, W),
        out_shape=jax.ShapeDtypeStruct((Mp, HW), x_nchw.dtype),
        grid_spec=pltpu.PrefetchScalarGridSpec(
            num_scalar_prefetch=0,
            grid=grid,
            in_specs=[
                pl.BlockSpec((G, HW), lambda i: (i, 0)),
                pl.BlockSpec((1, HW), lambda i: (0, 0)),
                pl.BlockSpec((1, HW), lambda i: (0, 0)),
                pl.BlockSpec((1, HW), lambda i: (0, 0)),
            ],
            out_specs=pl.BlockSpec((G, HW), lambda i: (i, 0)),
        ),
        compiler_params=pltpu.CompilerParams(
            dimension_semantics=("parallel",),
            vmem_limit_bytes=32 * 1024 * 1024,   # safe on v5e/v6e/v7x; tiles sized well below
        ),
        cost_estimate=cost,
    )(x, inv_cnt, col_map, row_map)

    if Mp != M:
        out = out[:M]
    return out.reshape(N, C, H, W)


# ----------------------------------------------------------------------------
# Pure-JAX reference (matches torch.nn.AvgPool2d(count_include_pad=False))
# ----------------------------------------------------------------------------
def ref_pooling(x, pool_size=3):
    k = pool_size
    pad = k // 2
    window = (1, 1, k, k)
    strides = (1, 1, 1, 1)
    padding = ((0, 0), (0, 0), (pad, pad), (pad, pad))
    s = lax.reduce_window(x, 0.0, lax.add, window, strides, padding)
    cnt = lax.reduce_window(jnp.ones_like(x), 0.0, lax.add, window, strides, padding)
    return s / cnt - x


# ----------------------------------------------------------------------------
if __name__ == "__main__":
    N, C, H, W = 2, 4, 16, 16
    pool_size = 3  # module default

    key = jax.random.PRNGKey(0)
    x = jax.random.normal(key, (N, C, H, W), jnp.float32)  # NCHW, like PyTorch

    out = jax.block_until_ready(pooling_forward(x, pool_size=pool_size))
    expected = jax.block_until_ready(ref_pooling(x, pool_size=pool_size))

    assert out.shape == expected.shape, (out.shape, expected.shape)
    assert jnp.allclose(out, expected, atol=1e-4, rtol=1e-4), \
        float(jnp.max(jnp.abs(out - expected)))

    print("KERNEL_OK")
</pallas_src>

<mosaic_0001>
module attributes {stable_mosaic.version = 11 : i64} {
  func.func @_pooling_kernel(%arg0: i32, %arg1: memref<8x256xf32, #tpu.memory_space<vmem>>, %arg2: memref<1x256xf32, #tpu.memory_space<vmem>>, %arg3: memref<1x256xi32, #tpu.memory_space<vmem>>, %arg4: memref<1x256xi32, #tpu.memory_space<vmem>>, %arg5: memref<8x256xf32, #tpu.memory_space<vmem>>) attributes {dimension_semantics = [#tpu.dimension_semantics<parallel>], iteration_bounds = array<i64: 1>, scalar_prefetch = 0 : i64, scratch_operands = 0 : i64, tpu.core_type = #tpu.core_type<tc>, window_params = [{transform_indices = @transform_0, window_bounds = array<i64: 8, 256>}, {pipeline_mode = #tpu.pipeline_mode<synchronous>, transform_indices = @transform_1, window_bounds = array<i64: 1, 256>}, {pipeline_mode = #tpu.pipeline_mode<synchronous>, transform_indices = @transform_2, window_bounds = array<i64: 1, 256>}, {pipeline_mode = #tpu.pipeline_mode<synchronous>, transform_indices = @transform_3, window_bounds = array<i64: 1, 256>}, {transform_indices = @transform_4, window_bounds = array<i64: 8, 256>}]} {
    %c0 = arith.constant 0 : index
    %c0_0 = arith.constant 0 : index
    %0 = vector.load %arg1[%c0, %c0_0] : memref<8x256xf32, #tpu.memory_space<vmem>>, vector<8x256xf32>
    %c0_1 = arith.constant 0 : index
    %c0_2 = arith.constant 0 : index
    %1 = vector.load %arg3[%c0_1, %c0_2] : memref<1x256xi32, #tpu.memory_space<vmem>>, vector<1x256xi32>
    %c0_3 = arith.constant 0 : index
    %c0_4 = arith.constant 0 : index
    %2 = vector.load %arg4[%c0_3, %c0_4] : memref<1x256xi32, #tpu.memory_space<vmem>>, vector<1x256xi32>
    %c1_i32 = arith.constant 1 : i32
    %3 = vector.broadcast %c1_i32 : i32 to vector<1x256xi32>
    %4 = arith.cmpi sge, %1, %3 : vector<1x256xi32>
    %5 = arith.extui %4 : vector<1x256xi1> to vector<1x256xi32>
    %6 = arith.sitofp %5 : vector<1x256xi32> to vector<1x256xf32>
    %c15_i32 = arith.constant 15 : i32
    %7 = vector.broadcast %c15_i32 : i32 to vector<1x256xi32>
    %8 = arith.cmpi slt, %1, %7 : vector<1x256xi32>
    %9 = arith.extui %8 : vector<1x256xi1> to vector<1x256xi32>
    %10 = arith.sitofp %9 : vector<1x256xi32> to vector<1x256xf32>
    %c1_i32_5 = arith.constant 1 : i32
    %11 = tpu.dynamic_rotate %0 by %c1_i32_5 dim 1 : vector<8x256xf32>, i32 -> vector<8x256xf32>
    %12 = vector.broadcast %6 : vector<1x256xf32> to vector<8x256xf32>
    %13 = arith.mulf %11, %12 : vector<8x256xf32>
    %14 = arith.addf %0, %13 : vector<8x256xf32>
    %c255_i32 = arith.constant 255 : i32
    %15 = tpu.dynamic_rotate %0 by %c255_i32 dim 1 : vector<8x256xf32>, i32 -> vector<8x256xf32>
    %16 = vector.broadcast %10 : vector<1x256xf32> to vector<8x256xf32>
    %17 = arith.mulf %15, %16 : vector<8x256xf32>
    %18 = arith.addf %14, %17 : vector<8x256xf32>
    %c1_i32_6 = arith.constant 1 : i32
    %19 = vector.broadcast %c1_i32_6 : i32 to vector<1x256xi32>
    %20 = arith.cmpi sge, %2, %19 : vector<1x256xi32>
    %21 = arith.extui %20 : vector<1x256xi1> to vector<1x256xi32>
    %22 = arith.sitofp %21 : vector<1x256xi32> to vector<1x256xf32>
    %c15_i32_7 = arith.constant 15 : i32
    %23 = vector.broadcast %c15_i32_7 : i32 to vector<1x256xi32>
    %24 = arith.cmpi slt, %2, %23 : vector<1x256xi32>
    %25 = arith.extui %24 : vector<1x256xi1> to vector<1x256xi32>
    %26 = arith.sitofp %25 : vector<1x256xi32> to vector<1x256xf32>
    %c16_i32 = arith.constant 16 : i32
    %27 = tpu.dynamic_rotate %18 by %c16_i32 dim 1 : vector<8x256xf32>, i32 -> vector<8x256xf32>
    %28 = vector.broadcast %22 : vector<1x256xf32> to vector<8x256xf32>
    %29 = arith.mulf %27, %28 : vector<8x256xf32>
    %30 = arith.addf %18, %29 : vector<8x256xf32>
    %c240_i32 = arith.constant 240 : i32
    %31 = tpu.dynamic_rotate %18 by %c240_i32 dim 1 : vector<8x256xf32>, i32 -> vector<8x256xf32>
    %32 = vector.broadcast %26 : vector<1x256xf32> to vector<8x256xf32>
    %33 = arith.mulf %31, %32 : vector<8x256xf32>
    %34 = arith.addf %30, %33 : vector<8x256xf32>
    %c0_8 = arith.constant 0 : index
    %c0_9 = arith.constant 0 : index
    %35 = vector.load %arg2[%c0_8, %c0_9] : memref<1x256xf32, #tpu.memory_space<vmem>>, vector<1x256xf32>
    %36 = vector.broadcast %35 : vector<1x256xf32> to vector<8x256xf32>
    %37 = arith.mulf %34, %36 : vector<8x256xf32>
    %38 = arith.subf %37, %0 : vector<8x256xf32>
    %c0_10 = arith.constant 0 : index
    %c0_11 = arith.constant 0 : index
    %39 = vector.load %arg5[%c0_10, %c0_11] : memref<8x256xf32, #tpu.memory_space<vmem>>, vector<8x256xf32>
    tpu.vector_store %arg5[%c0_10, %c0_11], %38 {strides = array<i32>} : memref<8x256xf32, #tpu.memory_space<vmem>>, vector<8x256xf32>,
    return
  }
  func.func @transform_0(%arg0: i32) -> (i32, i32) {
    %c0_i32 = arith.constant 0 : i32
    %c0_i32_0 = arith.constant 0 : i32
    return %arg0, %c0_i32 : i32, i32
  }
  func.func @transform_1(%arg0: i32) -> (i32, i32) {
    %c0_i32 = arith.constant 0 : i32
    %c0_i32_0 = arith.constant 0 : i32
    %c0_i32_1 = arith.constant 0 : i32
    return %c0_i32, %c0_i32_0 : i32, i32
  }
  func.func @transform_2(%arg0: i32) -> (i32, i32) {
    %c0_i32 = arith.constant 0 : i32
    %c0_i32_0 = arith.constant 0 : i32
    %c0_i32_1 = arith.constant 0 : i32
    return %c0_i32, %c0_i32_0 : i32, i32
  }
  func.func @transform_3(%arg0: i32) -> (i32, i32) {
    %c0_i32 = arith.constant 0 : i32
    %c0_i32_0 = arith.constant 0 : i32
    %c0_i32_1 = arith.constant 0 : i32
    return %c0_i32, %c0_i32_0 : i32, i32
  }
  func.func @transform_4(%arg0: i32) -> (i32, i32) {
    %c0_i32 = arith.constant 0 : i32
    %c0_i32_0 = arith.constant 0 : i32
    return %arg0, %c0_i32 : i32, i32
  }
}

</mosaic_0001>

<llo_original>
// kernel: tpu_custom_call.1
$region0: #{tpu_custom_call.1}
  #allocation0 [shape = 'u32[]', space=smem, size = 0x4, offset = 0x4, fixed_abs, tag = 'smem constant byte address 0x4 - core index']
  #allocation1 [shape = 'u32[144,128]{1,0:T(1,128)}', space=vmem, size = 0x12000, scoped, tag = 'internal scratch']
  %s0 = inlined_call_operand.hbm [shape: f32[8,256], index: 0, kind: input, shape index: {}]
  %s1 = inlined_call_operand.vmem [shape: f32[1,256], index: 1, kind: input, shape index: {}]
  %s2 = inlined_call_operand.vmem [shape: s32[1,256], index: 2, kind: input, shape index: {}]
  %s3 = inlined_call_operand.vmem [shape: s32[1,256], index: 3, kind: input, shape index: {}]
  %s4 = inlined_call_operand.hbm [shape: f32[8,256], index: 4, kind: output, shape index: {}]
  %s5 = sld [smem:[#allocation0]]
  $region30: #{tpu_custom_call.1} parent=0
    _
  %s7 = ssub.s32 1, %s5
  %s8 = scalar_select 0, %s7, %s5
  $region1: #{tpu_custom_call.1} parent=0
    #allocation2 [shape = 'u8[8192]{0}', space=vmem, size = 0x2000, scoped, tag = 'input window, operand 0, single buffered']
    #allocation3 [shape = 's32[1]{0}', space=sflag, size = 0x4, scoped, tag = 'scoped memory for tpu_custom_call.1']
    #allocation4 [shape = 's32[1]{0}', space=sflag, size = 0x4, scoped, tag = 'scoped memory for tpu_custom_call.1']
    #allocation5 [shape = 'u8[8192]{0}', space=vmem, size = 0x2000, scoped, tag = 'output window, operand 0, single buffered']
    %9 = vsyncpa [#allocation3], 0
    %10 = vsyncpa [#allocation4], 0
    // Predicated region
    $region2: #{tpu_custom_call.1} parent=1 // pred_check
      _
    $region3: #{tpu_custom_call.1} parent=1 // pred_check_branch
      %12 = sbr.rel (0) target = $region5
    $region4: #{tpu_custom_call.1} parent=1 // pred_region
      %s14 = ssub.s32 256, 256
      %15 = vsyncadd [#allocation3], %s14
      %s17 = sshll.u32 [#allocation2], 4
      %s18 = int_to_ptr.vmem [resolvable:$true] %s17
      %20 = dma.hbm_to_vmem [thread:$0]  %s0, 256, %s18, [#allocation3]
    $region5: #{tpu_custom_call.1} parent=1 // pred_fallthru
      _
    // Predicated region
    $region6: #{tpu_custom_call.1} parent=1 // pred_check
      _
    $region7: #{tpu_custom_call.1} parent=1 // pred_check_branch
      %22 = sbr.rel (0) target = $region9
    $region8: #{tpu_custom_call.1} parent=1 // pred_region
      _
    $region9: #{tpu_custom_call.1} parent=1 // pred_fallthru
      _
    // Predicated region
    $region10: #{tpu_custom_call.1} parent=1 // pred_check
      _
    $region11: #{tpu_custom_call.1} parent=1 // pred_check_branch
      %24 = sbr.rel (0) target = $region13
    $region12: #{tpu_custom_call.1} parent=1 // pred_region
      _
    $region13: #{tpu_custom_call.1} parent=1 // pred_fallthru
      _
    // Predicated region
    $region14: #{tpu_custom_call.1} parent=1 // pred_check
      _
    $region15: #{tpu_custom_call.1} parent=1 // pred_check_branch
      %26 = sbr.rel (0) target = $region17
    $region16: #{tpu_custom_call.1} parent=1 // pred_region
      _
    $region17: #{tpu_custom_call.1} parent=1 // pred_fallthru
      _
    // Predicated region
    $region18: #{tpu_custom_call.1} parent=1 // pred_check
      _
    $region19: #{tpu_custom_call.1} parent=1 // pred_check_branch
      %28 = sbr.rel (0) target = $region21
    $region20: #{tpu_custom_call.1} parent=1 // pred_region
      %29 = dma.done [#allocation3], 256
    $region21: #{tpu_custom_call.1} parent=1 // pred_fallthru
      _
    %v30 = vld [vmem:[#allocation2] sm:$0xff]
    %v31 = vld [vmem:[#allocation2 + $0x8] sm:$0xff]
    %v32 = vld [vmem:[%s2] sm:$0x3]
    %v33 = vld [vmem:[%s3] sm:$0x3]
    %vm34 = vcmp.ge.s32.totalorder %v32, 1
    %v35 = vsel %vm34, 1, 0
    %v36 = vcvt.s32.f32 %v35
    %vm37 = vcmp.lt.s32.totalorder %v32, 15
    %v38 = vsel %vm37, 1, 0
    %v39 = vcvt.s32.f32 %v38
    %40 = vrot.lane.b32.xlu0 %v30, 1
    %v41 = vpop.permute.xlu0 %40
    %42 = vrot.lane.b32.xlu0 %v31, 1
    %v43 = vpop.permute.xlu0 %42
    %v44 = vlaneseq
    %v45 = vand.u32 %v44, 127
    %vm46 = vcmp.lt.s32.totalorder %v45, 1
    %v47 = vsel %vm46, %v41, %v43
    %v48 = vsel %vm46, %v43, %v41
    %v50 = vlaneseq
    %v51 = vshrl.u32 %v50, 7
    %v52 = vsub.s32 0, %v51
    %v53 = vrot.slane %v36, %v52
    %v54 = vlaneseq
    %v55 = vshrl.u32 %v54, 7
    %v56 = vsub.s32 1, %v55
    %v57 = vrot.slane %v36, %v56
    %v60 = vmul.f32 %v48, %v53
    %v61 = vmul.f32 %v47, %v57
    %v62 = vadd.f32 %v30, %v60
    %v63 = vadd.f32 %v31, %v61
    %64 = vrot.lane.b32.xlu0 %v30, 127
    %v65 = vpop.permute.xlu0 %64
    %66 = vrot.lane.b32.xlu0 %v31, 127
    %v67 = vpop.permute.xlu0 %66
    %vm68 = vcmp.lt.s32.totalorder %v45, 127
    %v69 = vsel %vm68, %v65, %v67
    %v70 = vsel %vm68, %v67, %v65
    %v72 = vlaneseq
    %v73 = vshrl.u32 %v72, 7
    %v74 = vsub.s32 0, %v73
    %v75 = vrot.slane %v39, %v74
    %v76 = vlaneseq
    %v77 = vshrl.u32 %v76, 7
    %v78 = vsub.s32 1, %v77
    %v79 = vrot.slane %v39, %v78
    %v82 = vmul.f32 %v69, %v75
    %v83 = vmul.f32 %v70, %v79
    %v84 = vadd.f32 %v62, %v82
    %v85 = vadd.f32 %v63, %v83
    %vm86 = vcmp.ge.s32.totalorder %v33, 1
    %v87 = vsel %vm86, 1, 0
    %v88 = vcvt.s32.f32 %v87
    %vm89 = vcmp.lt.s32.totalorder %v33, 15
    %v90 = vsel %vm89, 1, 0
    %v91 = vcvt.s32.f32 %v90
    %92 = vrot.lane.b32.xlu0 %v84, 16
    %v93 = vpop.permute.xlu0 %92
    %94 = vrot.lane.b32.xlu0 %v85, 16
    %v95 = vpop.permute.xlu0 %94
    %vm96 = vcmp.lt.s32.totalorder %v45, 16
    %v97 = vsel %vm96, %v93, %v95
    %v98 = vsel %vm96, %v95, %v93
    %v100 = vlaneseq
    %v101 = vshrl.u32 %v100, 7
    %v102 = vsub.s32 0, %v101
    %v103 = vrot.slane %v88, %v102
    %v104 = vlaneseq
    %v105 = vshrl.u32 %v104, 7
    %v106 = vsub.s32 1, %v105
    %v107 = vrot.slane %v88, %v106
    %v110 = vmul.f32 %v98, %v103
    %v111 = vmul.f32 %v97, %v107
    %v112 = vadd.f32 %v84, %v110
    %v113 = vadd.f32 %v85, %v111
    %114 = vrot.lane.b32.xlu0 %v84, 112
    %v115 = vpop.permute.xlu0 %114
    %116 = vrot.lane.b32.xlu0 %v85, 112
    %v117 = vpop.permute.xlu0 %116
    %vm118 = vcmp.lt.s32.totalorder %v45, 112
    %v119 = vsel %vm118, %v115, %v117
    %v120 = vsel %vm118, %v117, %v115
    %v122 = vlaneseq
    %v123 = vshrl.u32 %v122, 7
    %v124 = vsub.s32 0, %v123
    %v125 = vrot.slane %v91, %v124
    %v126 = vlaneseq
    %v127 = vshrl.u32 %v126, 7
    %v128 = vsub.s32 1, %v127
    %v129 = vrot.slane %v91, %v128
    %v132 = vmul.f32 %v119, %v125
    %v133 = vmul.f32 %v120, %v129
    %v134 = vadd.f32 %v112, %v132
    %v135 = vadd.f32 %v113, %v133
    %v136 = vld [vmem:[%s1] sm:$0x3]
    %v138 = vlaneseq
    %v139 = vshrl.u32 %v138, 7
    %v140 = vsub.s32 0, %v139
    %v141 = vrot.slane %v136, %v140
    %v142 = vlaneseq
    %v143 = vshrl.u32 %v142, 7
    %v144 = vsub.s32 1, %v143
    %v145 = vrot.slane %v136, %v144
    %v148 = vmul.f32 %v134, %v141
    %v149 = vmul.f32 %v135, %v145
    %v150 = vsub.f32 %v148, %v30
    %v151 = vsub.f32 %v149, %v31
    %152 = vst [vmem:[#allocation5] sm:$0xff] %v150
    %153 = vst [vmem:[#allocation5 + $0x8] sm:$0xff] %v151
    // Predicated region
    $region22: #{tpu_custom_call.1} parent=1 // pred_check
      _
    $region23: #{tpu_custom_call.1} parent=1 // pred_check_branch
      %155 = sbr.rel (0) target = $region25
    $region24: #{tpu_custom_call.1} parent=1 // pred_region
      %s157 = ssub.s32 256, 256
      %158 = vsyncadd [#allocation4], %s157
      %s160 = sshll.u32 [#allocation5], 4
      %s161 = int_to_ptr.vmem [resolvable:$true] %s160
      %163 = dma.vmem_to_hbm [thread:$0]  %s161, 256, %s4, [#allocation4]
    $region25: #{tpu_custom_call.1} parent=1 // pred_fallthru
      _
    // Predicated region
    $region26: #{tpu_custom_call.1} parent=1 // pred_check
      _
    $region27: #{tpu_custom_call.1} parent=1 // pred_check_branch
      %165 = sbr.rel (0) target = $region29
    $region28: #{tpu_custom_call.1} parent=1 // pred_region
      %166 = dma.done [#allocation4], 256
    $region29: #{tpu_custom_call.1} parent=1 // pred_fallthru
      _
    %167 = vsyncpa [#allocation3], 1
    %168 = vsyncpa [#allocation4], 1

</llo_original>
